<compile_context>
chip_gen: v7x
topology: tpu7x:2x2x1
jax: 0.10.0
libtpu: 0.0.40
codegen_flags: <defaults>
</compile_context>

<pallas_src>
import functools

import jax
import jax.numpy as jnp
from jax import lax
from jax.experimental import pallas as pl
from jax.experimental.pallas import tpu as pltpu


def _round_up(x: int, m: int) -> int:
    return ((x + m - 1) // m) * m


def _lane_pad(d: int) -> int:
    # 256-align (v6e/v7x MXU output tile) once past one 128-lane group.
    return 128 if d <= 128 else _round_up(d, 256)


def _largest_divisor_leq(n: int, cap: int) -> int:
    best = 1
    for d in range(1, min(n, cap) + 1):
        if n % d == 0:
            best = d
    return best


def _normalize_rows_f32(x_f32):
    # F.normalize(text, p=2, dim=1): x / max(||x||_2, 1e-12)  (EUP rsqrt)
    sq = jnp.sum(x_f32 * x_f32, axis=1, keepdims=True)
    return x_f32 * lax.rsqrt(jnp.maximum(sq, 1e-24))


# ---------------------------------------------------------------------------
# Pass 1: s = sum over rows of the L2-normalized text.  Accumulator output
# block (constant index_map) + pl.when init -> grid axis is "arbitrary".
# ---------------------------------------------------------------------------
def _rowsum_kernel(text_ref, s_ref):
    xn = _normalize_rows_f32(text_ref[...].astype(jnp.float32))

    @pl.when(pl.program_id(0) == 0)
    def _():
        s_ref[...] = jnp.zeros_like(s_ref)

    s_ref[...] += jnp.sum(xn, axis=0, keepdims=True)


# ---------------------------------------------------------------------------
# Pass 2: per (row-tile, out-col-tile), produce the final output.
#   text tile is constant along the (fast) column axis -> not re-fetched.
#   W_l^T column blocks are streamed; t / bias are tiny residents.
# ---------------------------------------------------------------------------
def _encode_kernel(text_ref, t_ref, wlt_ref, b_ref, out_ref, *, n_rows,
                   mxu_dtype):
    xn = _normalize_rows_f32(text_ref[...].astype(jnp.float32))

    # mean(edges, dim=1) = (1/N) * xn . t : VPU broadcast-mul + lane reduce,
    # keeping the 1-column contraction off the MXU.
    mean_e = jnp.sum(xn * t_ref[...], axis=1, keepdims=True) * (1.0 / n_rows)
    weights = jax.nn.sigmoid(mean_e)          # f32, EUP

    # lin = x @ W_l.T + b  (W_l pre-transposed in wrapper -> plain MXU matmul)
    xc = xn.astype(mxu_dtype)
    lin = jnp.dot(xc, wlt_ref[...], preferred_element_type=jnp.float32)
    lin = lin + b_ref[...].astype(jnp.float32)

    out_ref[...] = (weights * lin).astype(out_ref.dtype)


def text_gnn_encoder(text, w_bilinear, w_linear, b_linear, *,
                     block_rows=256, block_rows_pass1=1024, block_cols=2048,
                     mxu_dtype=jnp.bfloat16):
    """text: [N, in_dim]; w_bilinear: [in_dim, in_dim];
    w_linear: [out_dim, in_dim]; b_linear: [out_dim] -> out: [N, out_dim]."""
    N, in_dim = text.shape
    out_dim = w_linear.shape[0]
    in_dt = text.dtype
    mxu_dtype = jnp.dtype(mxu_dtype)

    dp = _lane_pad(in_dim)
    odp = _lane_pad(out_dim)

    # --- row tiling ---------------------------------------------------------
    sub = 8 if jnp.dtype(in_dt).itemsize >= 4 else 16   # sublane packing
    tm2 = min(_round_up(block_rows, sub), _round_up(N, sub))
    # Ensure >= 2 row tiles when possible so the "parallel" row axis can shard
    # across TensorCores (v7x megacore); no-op on v5e/v6e.
    if (N + tm2 - 1) // tm2 == 1 and N > sub:
        tm2 = _round_up((N + 1) // 2, sub)
    np2 = _round_up(N, tm2)
    n_row_tiles = np2 // tm2

    # Pass-1 tile: as large as possible (HBM-bound), multiple of tm2 so the
    # same padded text array serves both passes.
    tm1 = tm2 * _largest_divisor_leq(np2 // tm2,
                                     max(1, block_rows_pass1 // tm2))
    n_tiles1 = np2 // tm1

    # --- output-column tiling (stream W_l on v7x-sized problems) -------------
    if odp <= block_cols:
        tn = odp
    else:
        tn = 256 * _largest_divisor_leq(odp // 256, block_cols // 256)
    n_col_tiles = odp // tn

    # --- operand prep (skip the pad copy when already aligned) ---------------
    if np2 == N and dp == in_dim:
        text_p = text
    else:
        text_p = jnp.zeros((np2, dp), in_dt).at[:N, :in_dim].set(text)

    if odp == out_dim and dp == in_dim:
        wlt_p = w_linear.T.astype(mxu_dtype)
    else:
        wlt_p = jnp.zeros((dp, odp), mxu_dtype).at[:in_dim, :out_dim].set(
            w_linear.T.astype(mxu_dtype))
    b_p = jnp.zeros((1, odp), jnp.float32).at[0, :out_dim].set(
        b_linear.astype(jnp.float32))

    itemsz = jnp.dtype(in_dt).itemsize
    mxusz = mxu_dtype.itemsize

    # --- pass 1: global row-sum of normalized text ---------------------------
    vmem1 = 2 * tm1 * dp * itemsz + 2 * tm1 * dp * 4 + 2 * dp * 4 + (4 << 20)
    vmem1 = int(min(max(vmem1, 32 << 20), 100 << 20))

    s = pl.pallas_call(
        _rowsum_kernel,
        out_shape=jax.ShapeDtypeStruct((1, dp), jnp.float32),
        grid=(n_tiles1,),
        in_specs=[pl.BlockSpec((tm1, dp), lambda i: (i, 0))],
        out_specs=pl.BlockSpec((1, dp), lambda i: (0, 0)),
        compiler_params=pltpu.CompilerParams(
            dimension_semantics=("arbitrary",),
            vmem_limit_bytes=vmem1),
    )(text_p)

    # --- between passes: t = s @ W_b (tiny, plain XLA; W_b never padded) ------
    t = s[:, :in_dim] @ w_bilinear.astype(jnp.float32)        # [1, in_dim] f32
    if dp != in_dim:
        t = jnp.zeros((1, dp), jnp.float32).at[:, :in_dim].set(t)

    # --- pass 2: per-tile encoding -------------------------------------------
    vmem2 = (2 * tm2 * dp * itemsz        # text tiles (double-buffered)
             + 2 * dp * tn * mxusz        # W_l^T column blocks
             + 2 * tm2 * tn * itemsz      # output tiles
             + 2 * dp * 4 + 2 * tn * 4    # t, bias residents
             + 4 * tm2 * dp * 4           # f32 intermediates (xn, xc, ...)
             + 2 * tm2 * tn * 4           # f32 lin
             + (4 << 20))                 # headroom
    vmem2 = int(min(max(vmem2, 32 << 20), 100 << 20))

    out_p = pl.pallas_call(
        functools.partial(_encode_kernel, n_rows=N, mxu_dtype=mxu_dtype),
        out_shape=jax.ShapeDtypeStruct((np2, odp), in_dt),
        grid=(n_row_tiles, n_col_tiles),
        in_specs=[
            pl.BlockSpec((tm2, dp), lambda i, j: (i, 0)),   # text (const in j)
            pl.BlockSpec((1, dp), lambda i, j: (0, 0)),     # t      (resident)
            pl.BlockSpec((dp, tn), lambda i, j: (0, j)),    # W_l^T  (streamed)
            pl.BlockSpec((1, tn), lambda i, j: (0, j)),     # bias
        ],
        out_specs=pl.BlockSpec((tm2, tn), lambda i, j: (i, j)),
        compiler_params=pltpu.CompilerParams(
            dimension_semantics=("parallel", "parallel"),
            vmem_limit_bytes=vmem2),
    )(text_p, t, wlt_p, b_p)

    return out_p[:N, :out_dim]


def _reference(text, w_bilinear, w_linear, b_linear):
    x = text.astype(jnp.float32)
    norm = jnp.sqrt(jnp.sum(x * x, axis=1, keepdims=True))
    x = x / jnp.maximum(norm, 1e-12)
    edges = (x @ w_bilinear.T) @ x.T
    weights = jax.nn.sigmoid(jnp.mean(edges, axis=1, keepdims=True))
    return weights * (x @ w_linear.T + b_linear[None, :])


if __name__ == "__main__":
    N, in_dim, out_dim = 8, 32, 16

    key = jax.random.PRNGKey(0)
    k_text, k_wb, k_wl, k_b = jax.random.split(key, 4)

    text = jax.random.normal(k_text, (N, in_dim), dtype=jnp.float32)
    bound = 1.0 / (in_dim ** 0.5)
    w_bilinear = jax.random.uniform(k_wb, (in_dim, in_dim),
                                    minval=-bound, maxval=bound,
                                    dtype=jnp.float32)
    w_linear = jax.random.uniform(k_wl, (out_dim, in_dim),
                                  minval=-bound, maxval=bound,
                                  dtype=jnp.float32)
    b_linear = jax.random.uniform(k_b, (out_dim,),
                                  minval=-bound, maxval=bound,
                                  dtype=jnp.float32)

    ref = _reference(text, w_bilinear, w_linear, b_linear)

    # f32 MXU path (tight check against the PyTorch-equivalent reference).
    out_f32 = jax.block_until_ready(
        text_gnn_encoder(text, w_bilinear, w_linear, b_linear,
                         mxu_dtype=jnp.float32))
    assert out_f32.shape == (N, out_dim), out_f32.shape
    assert jnp.allclose(out_f32, ref, atol=1e-4, rtol=5e-3), \
        "f32 mismatch vs reference"

    # Default bf16 MXU feed (recommended on v5e/v6e/v7x); looser tolerance.
    out_bf16 = jax.block_until_ready(
        text_gnn_encoder(text, w_bilinear, w_linear, b_linear))
    assert out_bf16.shape == (N, out_dim), out_bf16.shape
    assert jnp.allclose(out_bf16, ref, atol=5e-2, rtol=5e-2), \
        "bf16 mismatch vs reference"

    print("KERNEL_OK")
</pallas_src>

<mosaic_0001>
module attributes {stable_mosaic.version = 11 : i64} {
  func.func @_rowsum_kernel(%arg0: i32, %arg1: memref<8x128xf32, #tpu.memory_space<vmem>>, %arg2: memref<1x128xf32, #tpu.memory_space<vmem>>) attributes {dimension_semantics = [#tpu.dimension_semantics<arbitrary>], iteration_bounds = array<i64: 1>, scalar_prefetch = 0 : i64, scratch_operands = 0 : i64, tpu.core_type = #tpu.core_type<tc>, window_params = [{transform_indices = @transform_0, window_bounds = array<i64: 8, 128>}, {pipeline_mode = #tpu.pipeline_mode<synchronous>, transform_indices = @transform_1, window_bounds = array<i64: 1, 128>}]} {
    %c0 = arith.constant 0 : index
    %c0_0 = arith.constant 0 : index
    %0 = vector.load %arg1[%c0, %c0_0] : memref<8x128xf32, #tpu.memory_space<vmem>>, vector<8x128xf32>
    %1 = arith.mulf %0, %0 : vector<8x128xf32>
    %cst = arith.constant dense<0.000000e+00> : vector<8xf32>
    %2 = vector.multi_reduction <add>, %1, %cst [1] : vector<8x128xf32> to vector<8xf32>
    %3 = vector.shape_cast %2 : vector<8xf32> to vector<8x1xf32>
    %cst_1 = arith.constant 1.000000e-24 : f32
    %4 = vector.broadcast %cst_1 : f32 to vector<8x1xf32>
    %5 = arith.maximumf %3, %4 : vector<8x1xf32>
    %6 = math.rsqrt %5 : vector<8x1xf32>
    %7 = vector.broadcast %6 : vector<8x1xf32> to vector<8x128xf32>
    %8 = arith.mulf %0, %7 : vector<8x128xf32>
    %c0_i32 = arith.constant 0 : i32
    %9 = arith.cmpi eq, %arg0, %c0_i32 : i32
    %10 = arith.extui %9 : i1 to i32
    %c0_i32_2 = arith.constant 0 : i32
    %11 = arith.cmpi ne, %10, %c0_i32_2 : i32
    scf.if %11 {
      %cst_8 = arith.constant 0.000000e+00 : f32
      %17 = vector.broadcast %cst_8 : f32 to vector<1x128xf32>
      %c0_9 = arith.constant 0 : index
      %c0_10 = arith.constant 0 : index
      %18 = vector.load %arg2[%c0_9, %c0_10] : memref<1x128xf32, #tpu.memory_space<vmem>>, vector<1x128xf32>
      tpu.vector_store %arg2[%c0_9, %c0_10], %17 {strides = array<i32>} : memref<1x128xf32, #tpu.memory_space<vmem>>, vector<1x128xf32>,
    } else {
    }
    %c0_3 = arith.constant 0 : index
    %c0_4 = arith.constant 0 : index
    %12 = vector.load %arg2[%c0_3, %c0_4] : memref<1x128xf32, #tpu.memory_space<vmem>>, vector<1x128xf32>
    %cst_5 = arith.constant dense<0.000000e+00> : vector<128xf32>
    %13 = vector.multi_reduction <add>, %8, %cst_5 [0] : vector<8x128xf32> to vector<128xf32>
    %14 = vector.shape_cast %13 : vector<128xf32> to vector<1x128xf32>
    %15 = arith.addf %12, %14 : vector<1x128xf32>
    %c0_6 = arith.constant 0 : index
    %c0_7 = arith.constant 0 : index
    %16 = vector.load %arg2[%c0_6, %c0_7] : memref<1x128xf32, #tpu.memory_space<vmem>>, vector<1x128xf32>
    tpu.vector_store %arg2[%c0_6, %c0_7], %15 {strides = array<i32>} : memref<1x128xf32, #tpu.memory_space<vmem>>, vector<1x128xf32>,
    return
  }
  func.func @transform_0(%arg0: i32) -> (i32, i32) {
    %c0_i32 = arith.constant 0 : i32
    %c0_i32_0 = arith.constant 0 : i32
    return %arg0, %c0_i32 : i32, i32
  }
  func.func @transform_1(%arg0: i32) -> (i32, i32) {
    %c0_i32 = arith.constant 0 : i32
    %c0_i32_0 = arith.constant 0 : i32
    %c0_i32_1 = arith.constant 0 : i32
    return %c0_i32, %c0_i32_0 : i32, i32
  }
}

</mosaic_0001>

<llo_original>
// kernel: tpu_custom_call.1
$region0: #{tpu_custom_call.1}
  #allocation0 [shape = 'u32[]', space=smem, size = 0x4, offset = 0x4, fixed_abs, tag = 'smem constant byte address 0x4 - core index']
  #allocation1 [shape = 'u32[144,128]{1,0:T(1,128)}', space=vmem, size = 0x12000, scoped, tag = 'internal scratch']
  %s0 = inlined_call_operand.hbm [shape: f32[8,128], index: 0, kind: input, shape index: {}]
  %s1 = inlined_call_operand.hbm [shape: f32[1,128], index: 1, kind: output, shape index: {}]
  %s2 = sld [smem:[#allocation0]]
  $region22: #{tpu_custom_call.1} parent=0
    _
  %s4 = ssub.s32 1, %s2
  %s5 = scalar_select 0, %s4, %s2
  $region1: #{tpu_custom_call.1} parent=0
    #allocation2 [shape = 'u8[4096]{0}', space=vmem, size = 0x1000, scoped, tag = 'input window, operand 0, single buffered']
    #allocation3 [shape = 's32[1]{0}', space=sflag, size = 0x4, scoped, tag = 'scoped memory for tpu_custom_call.1']
    #allocation4 [shape = 's32[1]{0}', space=sflag, size = 0x4, scoped, tag = 'scoped memory for tpu_custom_call.1']
    #allocation5 [shape = 'u8[512]{0}', space=vmem, size = 0x400, scoped, tag = 'output window, operand 0, single buffered']
    %6 = vsyncpa [#allocation3], 0
    %7 = vsyncpa [#allocation4], 0
    // Predicated region
    $region2: #{tpu_custom_call.1} parent=1 // pred_check
      _
    $region3: #{tpu_custom_call.1} parent=1 // pred_check_branch
      %9 = sbr.rel (0) target = $region5
    $region4: #{tpu_custom_call.1} parent=1 // pred_region
      %s11 = ssub.s32 128, 128
      %12 = vsyncadd [#allocation3], %s11
      %s14 = sshll.u32 [#allocation2], 4
      %s15 = int_to_ptr.vmem [resolvable:$true] %s14
      %17 = dma.hbm_to_vmem [thread:$0]  %s0, 128, %s15, [#allocation3]
    $region5: #{tpu_custom_call.1} parent=1 // pred_fallthru
      _
    // Predicated region
    $region6: #{tpu_custom_call.1} parent=1 // pred_check
      _
    $region7: #{tpu_custom_call.1} parent=1 // pred_check_branch
      %19 = sbr.rel (0) target = $region9
    $region8: #{tpu_custom_call.1} parent=1 // pred_region
      %20 = dma.done [#allocation3], 128
    $region9: #{tpu_custom_call.1} parent=1 // pred_fallthru
      _
    %v21 = vld [vmem:[#allocation2] sm:$0xff]
    %v22 = vmul.f32 %v21, %v21
    %23 = vadd.xlane.f32.xlu0 %v22
    %v24 = vpop.xlane.xlu0 %23
    %v25 = vmax.f32 %v24, 1e-24
    %v26 = vrsqrt.pop %v25
    %v27 = vmul.f32 %v21, %v26
    %p28 = scmp.eq.s32.totalorder 0, 0
    // Predicated region
    $region10: #{tpu_custom_call.1} parent=1 // pred_check
      %p29 = pneg %p28
    $region11: #{tpu_custom_call.1} parent=1 // pred_check_branch
      %31 = sbr.rel (%p29) target = $region13
    $region12: #{tpu_custom_call.1} parent=1 // pred_region
      %32 = vst [vmem:[#allocation5] sm:$0x1] 0.0
    $region13: #{tpu_custom_call.1} parent=1 // pred_fallthru
      _
    %v33 = vld [vmem:[#allocation5] sm:$0x1]
    %v34 = vrot.slane %v27, 4
    %v35 = vadd.f32 %v27, %v34
    %v36 = vrot.slane %v35, 2
    %v37 = vadd.f32 %v35, %v36
    %v38 = vrot.slane %v37, 1
    %v39 = vadd.f32 %v37, %v38
    %v40 = vadd.f32 %v33, %v39
    %41 = vst [vmem:[#allocation5] sm:$0x1] %v40
    // Predicated region
    $region14: #{tpu_custom_call.1} parent=1 // pred_check
      _
    $region15: #{tpu_custom_call.1} parent=1 // pred_check_branch
      %43 = sbr.rel (0) target = $region17
    $region16: #{tpu_custom_call.1} parent=1 // pred_region
      %s45 = ssub.s32 16, 16
      %46 = vsyncadd [#allocation4], %s45
      %s48 = sshll.u32 [#allocation5], 4
      %s49 = int_to_ptr.vmem [resolvable:$true] %s48
      %51 = dma.vmem_to_hbm [thread:$0]  %s49, 16, %s1, [#allocation4]
    $region17: #{tpu_custom_call.1} parent=1 // pred_fallthru
      _
    // Predicated region
    $region18: #{tpu_custom_call.1} parent=1 // pred_check
      _
    $region19: #{tpu_custom_call.1} parent=1 // pred_check_branch
      %53 = sbr.rel (0) target = $region21
    $region20: #{tpu_custom_call.1} parent=1 // pred_region
      %54 = dma.done [#allocation4], 16
    $region21: #{tpu_custom_call.1} parent=1 // pred_fallthru
      _
    %55 = vsyncpa [#allocation3], 1
    %56 = vsyncpa [#allocation4], 1

</llo_original>
